<compile_context>
chip_gen: v7x
topology: tpu7x:2x2x1
jax: 0.10.0
libtpu: 0.0.40
codegen_flags: <defaults>
</compile_context>

<pallas_src>
import jax
import jax.numpy as jnp
from jax.experimental import pallas as pl
from jax.experimental.pallas import tpu as pltpu

BN_EPS = 1e-5
LANES = 128


def fused_kernel(lhs_ref, w_ref, b_ref, pmax_ref, pmin_ref, stats_ref):
    """One grid step = one block of `B` images.

    lhs_ref  : (4, M, 9*Cin) bf16  im2col per 2x2-pooling phase, M = B*hh*wh
    w_ref    : (9*Cin, Coutp) bf16 conv weights (resident)
    b_ref    : (1, Coutp)     f32  conv bias (resident)
    pmax_ref : (M, Coutp)     f32  max over the pooling window of ReLU(conv)
    pmin_ref : (M, Coutp)     f32  min over the window (for negative BN scale)
    stats_ref: (8, 2*Coutp)   f32  row 0 = [sum | sum_sq] of ReLU(conv) per channel
    """
    m = lhs_ref.shape[1]
    w_mat = w_ref[...]
    bias = b_ref[...]
    pmax = pmin = ssum = ssq = None
    for p in range(4):                       # 4 pooling phases, one K=9*Cin matmul each
        a = jnp.dot(lhs_ref[p], w_mat, preferred_element_type=jnp.float32)
        a = jnp.maximum(a + bias, 0.0)
        if p == 0:
            pmax, pmin, ssum, ssq = a, a, a, a * a
        else:
            pmax = jnp.maximum(pmax, a)
            pmin = jnp.minimum(pmin, a)
            ssum = ssum + a
            ssq = ssq + a * a
    pmax_ref[...] = pmax
    pmin_ref[...] = pmin
    # Per-channel sum / sum_sq with a single MXU push (ones-row @ lane-concat);
    # broadcast to 8 sublanes so the stats store is an unmasked vst.
    ones = jnp.ones((1, m), jnp.float32)
    srow = jnp.dot(ones, jnp.concatenate([ssum, ssq], axis=-1),
                   preferred_element_type=jnp.float32)
    stats_ref[...] = jnp.broadcast_to(srow, stats_ref.shape)


def _images_per_block(n, m_img, target_m=256, max_m=4096):
    """Largest batch-divisor whose fused M = B*hh*wh stays <= max_m, but once
    M has reached target_m keep >= 2 grid steps for pipelining / 2-TC sharding."""
    best = 1
    for b in range(2, n + 1):
        if n % b:
            continue
        if b * m_img > max_m:
            break
        if best * m_img >= target_m and n // b < 2:
            continue
        best = b
    return best


def conv_pool(x_nchw, w_pt, b, gamma, beta):
    """Forward pass of ConvPool. x_nchw: (N, Cin, H, W) f32, w_pt: (Cout, Cin, 3, 3)."""
    n, cin, h, w = x_nchw.shape
    cout = w_pt.shape[0]
    assert h % 2 == 0 and w % 2 == 0
    hh, wh = h // 2, w // 2
    k = 9 * cin
    m_img = hh * wh
    coutp = ((cout + LANES - 1) // LANES) * LANES
    pad_c = coutp - cout

    bimg = _images_per_block(n, m_img)
    nb = n // bimg
    m_blk = bimg * m_img

    # ---- wrapper-side im2col (bf16 early, no in-kernel reshapes) ------------
    xb = jnp.transpose(x_nchw, (0, 2, 3, 1)).astype(jnp.bfloat16)    # (N,H,W,Cin)
    xpad = jnp.pad(xb, ((0, 0), (1, 1), (1, 1), (0, 0)))             # (N,H+2,W+2,Cin)
    patches = jnp.concatenate(
        [xpad[:, ky:ky + h, kx:kx + w, :] for ky in range(3) for kx in range(3)],
        axis=-1)                                                     # (N,H,W,9*Cin)
    # split into the 4 pooling phases: phase 2*dy+dx holds conv rows/cols (2i+dy, 2j+dx)
    ph = patches.reshape(n, hh, 2, wh, 2, k).transpose(0, 2, 4, 1, 3, 5)
    ph = ph.reshape(n, 4, m_img, k)
    # fold `bimg` images into the matmul M dimension of each grid step
    lhs = ph.reshape(nb, bimg, 4, m_img, k).transpose(0, 2, 1, 3, 4)
    lhs = lhs.reshape(nb, 4, m_blk, k)

    # ---- parameters (Cout zero-padded to a lane-dense multiple of 128) ------
    w_k = jnp.transpose(w_pt, (2, 3, 1, 0)).reshape(k, cout)         # (9*Cin, Cout)
    w_k = jnp.pad(w_k, ((0, 0), (0, pad_c))).astype(jnp.bfloat16)    # (9*Cin, Coutp)
    b_p = jnp.pad(b.astype(jnp.float32), (0, pad_c)).reshape(1, coutp)
    g_p = jnp.pad(gamma.astype(jnp.float32), (0, pad_c))
    be_p = jnp.pad(beta.astype(jnp.float32), (0, pad_c))

    pmax, pmin, stats = pl.pallas_call(
        fused_kernel,
        out_shape=(
            jax.ShapeDtypeStruct((n * m_img, coutp), jnp.float32),
            jax.ShapeDtypeStruct((n * m_img, coutp), jnp.float32),
            jax.ShapeDtypeStruct((nb, 8, 2 * coutp), jnp.float32),
        ),
        grid=(nb,),
        in_specs=[
            pl.BlockSpec((None, 4, m_blk, k), lambda i: (i, 0, 0, 0)),
            pl.BlockSpec((k, coutp), lambda i: (0, 0)),         # resident weights
            pl.BlockSpec((1, coutp), lambda i: (0, 0)),         # resident bias
        ],
        out_specs=[
            pl.BlockSpec((m_blk, coutp), lambda i: (i, 0)),
            pl.BlockSpec((m_blk, coutp), lambda i: (i, 0)),
            pl.BlockSpec((None, 8, 2 * coutp), lambda i: (i, 0, 0)),
        ],
        compiler_params=pltpu.CompilerParams(
            dimension_semantics=("parallel",),
        ),
    )(lhs, w_k, b_p)

    # ---- tiny XLA glue: batch stats -> training-mode BN scale/shift ---------
    count = float(n * h * w)
    tot = jnp.sum(stats[:, 0, :], axis=0)                            # (2*Coutp,)
    mean = tot[:coutp] / count
    var = jnp.maximum(tot[coutp:] / count - mean * mean, 0.0)
    scale = g_p * jax.lax.rsqrt(var + BN_EPS)
    shift = be_p - mean * scale
    # TODO(synk): BatchNorm running_mean/running_var buffer updates (training
    # side effect) are not materialized; they do not affect the forward output.

    # max over pool window of (a*scale+shift) == (scale>=0 ? max(a) : min(a))*scale+shift
    pooled = jnp.where(scale >= 0.0, pmax, pmin)
    out = pooled * scale + shift                                     # (N*hh*wh, Coutp)
    out = out.reshape(n, hh, wh, coutp)[..., :cout]                  # drop channel pad
    return jnp.transpose(out, (0, 3, 1, 2))                          # back to NCHW


def reference(x, w, b, gamma, beta):
    """Pure-JAX reference matching torch semantics (training-mode BatchNorm)."""
    y = jax.lax.conv_general_dilated(
        x, w, (1, 1), ((1, 1), (1, 1)),
        dimension_numbers=("NCHW", "OIHW", "NCHW"),
    )
    y = y + b[None, :, None, None]
    y = jnp.maximum(y, 0.0)
    mean = y.mean(axis=(0, 2, 3), keepdims=True)
    var = ((y - mean) ** 2).mean(axis=(0, 2, 3), keepdims=True)
    y = (y - mean) * jax.lax.rsqrt(var + BN_EPS)
    y = y * gamma[None, :, None, None] + beta[None, :, None, None]
    return jax.lax.reduce_window(
        y, -jnp.inf, jax.lax.max, (1, 1, 2, 2), (1, 1, 2, 2), "VALID"
    )


if __name__ == "__main__":
    N, Cin, Cout, H, W = 2, 4, 8, 16, 16

    key = jax.random.PRNGKey(0)
    kx, kw, kb = jax.random.split(key, 3)
    x = jax.random.normal(kx, (N, Cin, H, W), jnp.float32)

    # Deterministic parameter init (Conv2d-like uniform; BN affine defaults).
    fan_in = Cin * 3 * 3
    bound = 1.0 / (fan_in ** 0.5)
    w = jax.random.uniform(kw, (Cout, Cin, 3, 3), jnp.float32, -bound, bound)
    b = jax.random.uniform(kb, (Cout,), jnp.float32, -bound, bound)
    gamma = jnp.ones((Cout,), jnp.float32)
    beta = jnp.zeros((Cout,), jnp.float32)

    out = jax.block_until_ready(conv_pool(x, w, b, gamma, beta))
    assert out.shape == (N, Cout, H // 2, W // 2)

    # Reference uses the same bf16-quantized conv operands as the kernel
    # (products exact, accumulation f32 in both), isolating kernel-logic
    # correctness from the deliberate bf16 cast of the MXU operands.
    xq = x.astype(jnp.bfloat16).astype(jnp.float32)
    wq = w.astype(jnp.bfloat16).astype(jnp.float32)
    ref = reference(xq, wq, b, gamma, beta)
    if not bool(jnp.allclose(out, ref, rtol=2e-3, atol=2e-3)):
        err = float(jnp.max(jnp.abs(out - ref)))
        raise AssertionError(f"mismatch vs reference, max abs err = {err:e}")

    print("KERNEL_OK")
</pallas_src>

<mosaic_0001>
module attributes {stable_mosaic.version = 11 : i64} {
  func.func @fused_kernel(%arg0: i32, %arg1: memref<1x4x128x36xbf16, #tpu.memory_space<vmem>>, %arg2: memref<36x128xbf16, #tpu.memory_space<vmem>>, %arg3: memref<1x128xf32, #tpu.memory_space<vmem>>, %arg4: memref<128x128xf32, #tpu.memory_space<vmem>>, %arg5: memref<128x128xf32, #tpu.memory_space<vmem>>, %arg6: memref<1x8x256xf32, #tpu.memory_space<vmem>>) attributes {dimension_semantics = [#tpu.dimension_semantics<parallel>], iteration_bounds = array<i64: 1>, scalar_prefetch = 0 : i64, scratch_operands = 0 : i64, tpu.core_type = #tpu.core_type<tc>, window_params = [{transform_indices = @transform_0, window_bounds = array<i64: 1, 4, 128, 36>}, {pipeline_mode = #tpu.pipeline_mode<synchronous>, transform_indices = @transform_1, window_bounds = array<i64: 36, 128>}, {pipeline_mode = #tpu.pipeline_mode<synchronous>, transform_indices = @transform_2, window_bounds = array<i64: 1, 128>}, {transform_indices = @transform_3, window_bounds = array<i64: 128, 128>}, {transform_indices = @transform_4, window_bounds = array<i64: 128, 128>}, {transform_indices = @transform_5, window_bounds = array<i64: 1, 8, 256>}]} {
    %c0 = arith.constant 0 : index
    %c0_0 = arith.constant 0 : index
    %0 = vector.load %arg2[%c0, %c0_0] : memref<36x128xbf16, #tpu.memory_space<vmem>>, vector<36x128xbf16>
    %c0_1 = arith.constant 0 : index
    %c0_2 = arith.constant 0 : index
    %1 = vector.load %arg3[%c0_1, %c0_2] : memref<1x128xf32, #tpu.memory_space<vmem>>, vector<1x128xf32>
    %c0_3 = arith.constant 0 : index
    %c0_4 = arith.constant 0 : index
    %c0_5 = arith.constant 0 : index
    %c0_6 = arith.constant 0 : index
    %2 = vector.load %arg1[%c0_3, %c0_4, %c0_5, %c0_6] : memref<1x4x128x36xbf16, #tpu.memory_space<vmem>>, vector<1x1x128x36xbf16>
    %3 = vector.shape_cast %2 : vector<1x1x128x36xbf16> to vector<128x36xbf16>
    %cst = arith.constant dense<0.000000e+00> : vector<128x128xf32>
    %4 = tpu.matmul %3, %0, %cst {dimension_numbers = #tpu.dot_dimension_numbers<[1], [0], [0], [1], [0, 0, 1, 1], [], []>} : vector<128x36xbf16>, vector<36x128xbf16>, vector<128x128xf32> -> vector<128x128xf32>
    %5 = vector.broadcast %1 : vector<1x128xf32> to vector<128x128xf32>
    %6 = arith.addf %4, %5 : vector<128x128xf32>
    %cst_7 = arith.constant 0.000000e+00 : f32
    %7 = vector.broadcast %cst_7 : f32 to vector<128x128xf32>
    %8 = arith.maximumf %6, %7 : vector<128x128xf32>
    %9 = arith.mulf %8, %8 : vector<128x128xf32>
    %c0_8 = arith.constant 0 : index
    %c1 = arith.constant 1 : index
    %c0_9 = arith.constant 0 : index
    %c0_10 = arith.constant 0 : index
    %10 = vector.load %arg1[%c0_8, %c1, %c0_9, %c0_10] : memref<1x4x128x36xbf16, #tpu.memory_space<vmem>>, vector<1x1x128x36xbf16>
    %11 = vector.shape_cast %10 : vector<1x1x128x36xbf16> to vector<128x36xbf16>
    %cst_11 = arith.constant dense<0.000000e+00> : vector<128x128xf32>
    %12 = tpu.matmul %11, %0, %cst_11 {dimension_numbers = #tpu.dot_dimension_numbers<[1], [0], [0], [1], [0, 0, 1, 1], [], []>} : vector<128x36xbf16>, vector<36x128xbf16>, vector<128x128xf32> -> vector<128x128xf32>
    %13 = vector.broadcast %1 : vector<1x128xf32> to vector<128x128xf32>
    %14 = arith.addf %12, %13 : vector<128x128xf32>
    %cst_12 = arith.constant 0.000000e+00 : f32
    %15 = vector.broadcast %cst_12 : f32 to vector<128x128xf32>
    %16 = arith.maximumf %14, %15 : vector<128x128xf32>
    %17 = arith.maximumf %8, %16 : vector<128x128xf32>
    %18 = arith.minimumf %8, %16 : vector<128x128xf32>
    %19 = arith.addf %8, %16 : vector<128x128xf32>
    %20 = arith.mulf %16, %16 : vector<128x128xf32>
    %21 = arith.addf %9, %20 : vector<128x128xf32>
    %c0_13 = arith.constant 0 : index
    %c2 = arith.constant 2 : index
    %c0_14 = arith.constant 0 : index
    %c0_15 = arith.constant 0 : index
    %22 = vector.load %arg1[%c0_13, %c2, %c0_14, %c0_15] : memref<1x4x128x36xbf16, #tpu.memory_space<vmem>>, vector<1x1x128x36xbf16>
    %23 = vector.shape_cast %22 : vector<1x1x128x36xbf16> to vector<128x36xbf16>
    %cst_16 = arith.constant dense<0.000000e+00> : vector<128x128xf32>
    %24 = tpu.matmul %23, %0, %cst_16 {dimension_numbers = #tpu.dot_dimension_numbers<[1], [0], [0], [1], [0, 0, 1, 1], [], []>} : vector<128x36xbf16>, vector<36x128xbf16>, vector<128x128xf32> -> vector<128x128xf32>
    %25 = vector.broadcast %1 : vector<1x128xf32> to vector<128x128xf32>
    %26 = arith.addf %24, %25 : vector<128x128xf32>
    %cst_17 = arith.constant 0.000000e+00 : f32
    %27 = vector.broadcast %cst_17 : f32 to vector<128x128xf32>
    %28 = arith.maximumf %26, %27 : vector<128x128xf32>
    %29 = arith.maximumf %17, %28 : vector<128x128xf32>
    %30 = arith.minimumf %18, %28 : vector<128x128xf32>
    %31 = arith.addf %19, %28 : vector<128x128xf32>
    %32 = arith.mulf %28, %28 : vector<128x128xf32>
    %33 = arith.addf %21, %32 : vector<128x128xf32>
    %c0_18 = arith.constant 0 : index
    %c3 = arith.constant 3 : index
    %c0_19 = arith.constant 0 : index
    %c0_20 = arith.constant 0 : index
    %34 = vector.load %arg1[%c0_18, %c3, %c0_19, %c0_20] : memref<1x4x128x36xbf16, #tpu.memory_space<vmem>>, vector<1x1x128x36xbf16>
    %35 = vector.shape_cast %34 : vector<1x1x128x36xbf16> to vector<128x36xbf16>
    %cst_21 = arith.constant dense<0.000000e+00> : vector<128x128xf32>
    %36 = tpu.matmul %35, %0, %cst_21 {dimension_numbers = #tpu.dot_dimension_numbers<[1], [0], [0], [1], [0, 0, 1, 1], [], []>} : vector<128x36xbf16>, vector<36x128xbf16>, vector<128x128xf32> -> vector<128x128xf32>
    %37 = vector.broadcast %1 : vector<1x128xf32> to vector<128x128xf32>
    %38 = arith.addf %36, %37 : vector<128x128xf32>
    %cst_22 = arith.constant 0.000000e+00 : f32
    %39 = vector.broadcast %cst_22 : f32 to vector<128x128xf32>
    %40 = arith.maximumf %38, %39 : vector<128x128xf32>
    %41 = arith.maximumf %29, %40 : vector<128x128xf32>
    %42 = arith.minimumf %30, %40 : vector<128x128xf32>
    %43 = arith.addf %31, %40 : vector<128x128xf32>
    %44 = arith.mulf %40, %40 : vector<128x128xf32>
    %45 = arith.addf %33, %44 : vector<128x128xf32>
    %c0_23 = arith.constant 0 : index
    %c0_24 = arith.constant 0 : index
    %46 = vector.load %arg4[%c0_23, %c0_24] : memref<128x128xf32, #tpu.memory_space<vmem>>, vector<128x128xf32>
    tpu.vector_store %arg4[%c0_23, %c0_24], %41 {strides = array<i32>} : memref<128x128xf32, #tpu.memory_space<vmem>>, vector<128x128xf32>,
    %c0_25 = arith.constant 0 : index
    %c0_26 = arith.constant 0 : index
    %47 = vector.load %arg5[%c0_25, %c0_26] : memref<128x128xf32, #tpu.memory_space<vmem>>, vector<128x128xf32>
    tpu.vector_store %arg5[%c0_25, %c0_26], %42 {strides = array<i32>} : memref<128x128xf32, #tpu.memory_space<vmem>>, vector<128x128xf32>,
    %cst_27 = arith.constant 1.000000e+00 : f32
    %48 = vector.broadcast %cst_27 : f32 to vector<1x128xf32>
    %49 = tpu.concatenate %43, %45 in 1 : vector<128x128xf32>, vector<128x128xf32> -> vector<128x256xf32>
    %cst_28 = arith.constant dense<0.000000e+00> : vector<1x256xf32>
    %50 = tpu.matmul %48, %49, %cst_28 {dimension_numbers = #tpu.dot_dimension_numbers<[1], [0], [0], [1], [0, 0, 1, 1], [], []>} : vector<1x128xf32>, vector<128x256xf32>, vector<1x256xf32> -> vector<1x256xf32>
    %51 = vector.shape_cast %50 : vector<1x256xf32> to vector<1x256xf32>
    %52 = vector.broadcast %51 : vector<1x256xf32> to vector<8x256xf32>
    %c0_29 = arith.constant 0 : index
    %c0_30 = arith.constant 0 : index
    %c0_31 = arith.constant 0 : index
    %53 = vector.load %arg6[%c0_29, %c0_30, %c0_31] : memref<1x8x256xf32, #tpu.memory_space<vmem>>, vector<1x8x256xf32>
    %54 = vector.shape_cast %53 : vector<1x8x256xf32> to vector<8x256xf32>
    %55 = vector.shape_cast %52 : vector<8x256xf32> to vector<1x8x256xf32>
    tpu.vector_store %arg6[%c0_29, %c0_30, %c0_31], %55 {strides = array<i32>} : memref<1x8x256xf32, #tpu.memory_space<vmem>>, vector<1x8x256xf32>,
    return
  }
  func.func @transform_0(%arg0: i32) -> (i32, i32, i32, i32) {
    %c0_i32 = arith.constant 0 : i32
    %c0_i32_0 = arith.constant 0 : i32
    %c0_i32_1 = arith.constant 0 : i32
    %c0_i32_2 = arith.constant 0 : i32
    return %arg0, %c0_i32, %c0_i32_0, %c0_i32_1 : i32, i32, i32, i32
  }
  func.func @transform_1(%arg0: i32) -> (i32, i32) {
    %c0_i32 = arith.constant 0 : i32
    %c0_i32_0 = arith.constant 0 : i32
    %c0_i32_1 = arith.constant 0 : i32
    return %c0_i32, %c0_i32_0 : i32, i32
  }
  func.func @transform_2(%arg0: i32) -> (i32, i32) {
    %c0_i32 = arith.constant 0 : i32
    %c0_i32_0 = arith.constant 0 : i32
    %c0_i32_1 = arith.constant 0 : i32
    return %c0_i32, %c0_i32_0 : i32, i32
  }
  func.func @transform_3(%arg0: i32) -> (i32, i32) {
    %c0_i32 = arith.constant 0 : i32
    %c0_i32_0 = arith.constant 0 : i32
    return %arg0, %c0_i32 : i32, i32
  }
  func.func @transform_4(%arg0: i32) -> (i32, i32) {
    %c0_i32 = arith.constant 0 : i32
    %c0_i32_0 = arith.constant 0 : i32
    return %arg0, %c0_i32 : i32, i32
  }
  func.func @transform_5(%arg0: i32) -> (i32, i32, i32) {
    %c0_i32 = arith.constant 0 : i32
    %c0_i32_0 = arith.constant 0 : i32
    %c0_i32_1 = arith.constant 0 : i32
    return %arg0, %c0_i32, %c0_i32_0 : i32, i32, i32
  }
}

</mosaic_0001>

<llo_original>
// kernel: tpu_custom_call.1
$region0: #{tpu_custom_call.1}
  #allocation0 [shape = 'u32[]', space=smem, size = 0x4, offset = 0x4, fixed_abs, tag = 'smem constant byte address 0x4 - core index']
  #allocation1 [shape = 'u32[144,128]{1,0:T(1,128)}', space=vmem, size = 0x12000, scoped, tag = 'internal scratch']
  %s0 = inlined_call_operand.vmem [shape: bf16[1,4,128,36], index: 0, kind: input, shape index: {}]
  %s1 = inlined_call_operand.vmem [shape: bf16[36,128], index: 1, kind: input, shape index: {}]
  %s2 = inlined_call_operand.vmem [shape: f32[1,128], index: 2, kind: input, shape index: {}]
  %s3 = inlined_call_operand.hbm [shape: f32[128,128], index: 3, kind: output, shape index: {0}]
  %s4 = inlined_call_operand.hbm [shape: f32[128,128], index: 4, kind: output, shape index: {1}]
  %s5 = inlined_call_operand.hbm [shape: f32[1,8,256], index: 5, kind: output, shape index: {2}]
  %6 = xla_tuple %s3, %s4, %s5
  %s7 = sld [smem:[#allocation0]]
  $region38: #{tpu_custom_call.1} parent=0
    _
  %s9 = ssub.s32 1, %s7
  %s10 = scalar_select 0, %s9, %s7
  $region1: #{tpu_custom_call.1} parent=0
    #allocation2 [shape = 'u8[65536]{0}', space=vmem, size = 0x10000, scoped, tag = 'output window, operand 0, single buffered']
    #allocation3 [shape = 's32[1]{0}', space=sflag, size = 0x4, scoped, tag = 'scoped memory for tpu_custom_call.1']
    #allocation4 [shape = 'u8[65536]{0}', space=vmem, size = 0x10000, scoped, tag = 'output window, operand 1, single buffered']
    #allocation5 [shape = 's32[1]{0}', space=sflag, size = 0x4, scoped, tag = 'scoped memory for tpu_custom_call.1']
    #allocation6 [shape = 'u8[8192]{0}', space=vmem, size = 0x2000, scoped, tag = 'output window, operand 2, single buffered']
    %11 = vsyncpa [#allocation3], 0
    %12 = vsyncpa [#allocation5], 0
    // Predicated region
    $region2: #{tpu_custom_call.1} parent=1 // pred_check
      _
    $region3: #{tpu_custom_call.1} parent=1 // pred_check_branch
      %14 = sbr.rel (0) target = $region5
    $region4: #{tpu_custom_call.1} parent=1 // pred_region
      _
    $region5: #{tpu_custom_call.1} parent=1 // pred_fallthru
      _
    // Predicated region
    $region6: #{tpu_custom_call.1} parent=1 // pred_check
      _
    $region7: #{tpu_custom_call.1} parent=1 // pred_check_branch
      %16 = sbr.rel (0) target = $region9
    $region8: #{tpu_custom_call.1} parent=1 // pred_region
      _
    $region9: #{tpu_custom_call.1} parent=1 // pred_fallthru
      _
    // Predicated region
    $region10: #{tpu_custom_call.1} parent=1 // pred_check
      _
    $region11: #{tpu_custom_call.1} parent=1 // pred_check_branch
      %18 = sbr.rel (0) target = $region13
    $region12: #{tpu_custom_call.1} parent=1 // pred_region
      _
    $region13: #{tpu_custom_call.1} parent=1 // pred_fallthru
      _
    %v20 = vld [vmem:[%s1] sm:$0xf]
    %v21 = vld [vmem:[%s1 + $0x4] sm:$0xf]
    %v22 = vld [vmem:[%s1 + $0x8] sm:$0xf]
    %v23 = vld [vmem:[%s1 + $0xc] sm:$0xf]
    %v24 = vld [vmem:[%s1 + $0x10] sm:$0x3]
    %v25 = vld [vmem:[%s2] sm:$0x1]
    %v26 = vld [vmem:[%s0] sm:$0xf]
    %v27 = vld [vmem:[%s0 + $0x4] sm:$0xf]
    %v28 = vld [vmem:[%s0 + $0x8] sm:$0xf]
    %v29 = vld [vmem:[%s0 + $0xc] sm:$0xf]
    %v30 = vld [vmem:[%s0 + $0x10] sm:$0xf]
    %v31 = vld [vmem:[%s0 + $0x14] sm:$0xf]
    %v32 = vld [vmem:[%s0 + $0x18] sm:$0xf]
    %v33 = vld [vmem:[%s0 + $0x1c] sm:$0xf]
    %v34 = vld [vmem:[%s0 + $0x20] sm:$0xf]
    %v35 = vld [vmem:[%s0 + $0x24] sm:$0xf]
    %v36 = vld [vmem:[%s0 + $0x28] sm:$0xf]
    %v37 = vld [vmem:[%s0 + $0x2c] sm:$0xf]
    %v38 = vld [vmem:[%s0 + $0x30] sm:$0xf]
    %v39 = vld [vmem:[%s0 + $0x34] sm:$0xf]
    %v40 = vld [vmem:[%s0 + $0x38] sm:$0xf]
    %v41 = vld [vmem:[%s0 + $0x3c] sm:$0xf]
    %v43 = vlaneseq
    %v44 = vshrl.u32 %v43, 7
    %v45 = vsub.s32 0, %v44
    %v46 = vrot.slane %v25, %v45
    %v64 = vunpack.c.l.b16 %v26
    %v65 = vunpack.c.l.b16 %v27
    %v66 = vunpack.c.l.b16 %v28
    %v67 = vunpack.c.l.b16 %v29
    %v68 = vunpack.c.l.b16 %v30
    %v69 = vunpack.c.l.b16 %v31
    %v70 = vunpack.c.l.b16 %v32
    %v71 = vunpack.c.l.b16 %v33
    %v72 = vunpack.c.l.b16 %v34
    %v73 = vunpack.c.l.b16 %v35
    %v74 = vunpack.c.l.b16 %v36
    %v75 = vunpack.c.l.b16 %v37
    %v76 = vunpack.c.l.b16 %v38
    %v77 = vunpack.c.l.b16 %v39
    %v78 = vunpack.c.l.b16 %v40
    %v79 = vunpack.c.l.b16 %v41
    %v80 = vpack.c.b16 %v65, %v64
    %v81 = vpack.c.b16 %v67, %v66
    %v82 = vpack.c.b16 %v69, %v68
    %v83 = vpack.c.b16 %v71, %v70
    %v84 = vpack.c.b16 %v73, %v72
    %v85 = vpack.c.b16 %v75, %v74
    %v86 = vpack.c.b16 %v77, %v76
    %v87 = vpack.c.b16 %v79, %v78
    %v93 = vunpack.c.l.b16 %v20
    %v94 = vunpack.c.l.b16 %v21
    %v95 = vunpack.c.l.b16 %v22
    %v96 = vunpack.c.l.b16 %v23
    %v97 = vunpack.c.l.b16 %v24
    %v98 = vpack.c.b16 %v94, %v93
    %v99 = vpack.c.b16 %v96, %v95
    %v100 = vpack.c.b16 %v97, %v97
    %vm103 = vcmask 293888
    %v105 = vsel %vm103, %v80, 0
    %v108 = vsel %vm103, %v81, 0
    %v111 = vsel %vm103, %v82, 0
    %v114 = vsel %vm103, %v83, 0
    %v117 = vsel %vm103, %v84, 0
    %v120 = vsel %vm103, %v85, 0
    %v123 = vsel %vm103, %v86, 0
    %v126 = vsel %vm103, %v87, 0
    %vm128 = vcmask 1041408
    %v130 = vsel %vm128, %v100, 0
    %132 = vmatprep.subr.bf16.mxu0 0
    %133 = vmatpush1.bf16.msra.mxu0 %v98
    %134 = vmatprep.subr.bf16.mxu0 0
    %135 = vmatpush1.bf16.msra.mxu0 %v99
    %136 = vmatprep.subr.bf16.mxu0 0
    %137 = vmatpush1.bf16.msra.mxu0 %v130
    %138 = vmatprep.subr.bf16.mxu0 0
    %139 = vmatpush1.bf16.msra.mxu0 0
    %140 = vmatprep.subr.bf16.mxu0 0
    %141 = vmatpush1.bf16.msra.mxu0 0
    %142 = vmatprep.subr.bf16.mxu0 0
    %143 = vmatpush1.bf16.msra.mxu0 0
    %144 = vmatprep.subr.bf16.mxu0 0
    %145 = vmatpush1.bf16.msra.mxu0 0
    %146 = vmatprep.subr.bf16.mxu0 0
    %147 = vmatpush1.bf16.msra.mxu0 0
    %148 = vmatprep.subr.bf16.mxu0 0
    %149 = vmatpush1.bf16.msra.mxu0 0
    %150 = vmatprep.subr.bf16.mxu0 0
    %151 = vmatpush1.bf16.msra.mxu0 0
    %152 = vmatprep.subr.bf16.mxu0 0
    %153 = vmatpush1.bf16.msra.mxu0 0
    %154 = vmatprep.subr.bf16.mxu0 0
    %155 = vmatpush1.bf16.msra.mxu0 0
    %156 = vmatprep.subr.bf16.mxu0 0
    %157 = vmatpush1.bf16.msra.mxu0 0
    %158 = vmatprep.subr.bf16.mxu0 0
    %159 = vmatpush1.bf16.msra.mxu0 0
    %160 = vmatprep.subr.bf16.mxu0 0
    %161 = vmatpush1.bf16.msra.mxu0 0
    %162 = vmatprep.subr.bf16.mxu0 0
    %163 = vmatpush1.bf16.msra.mxu0 0
    %164 = vmatprep.mubr.bf16.mxu0 0
    %165 = vmatmul.mubr.bf16.gmra.mrb[0].mxu0 %v105
    %v166 = vpop.f32.mrb[0].mxu0
    %v167 = vadd.f32 %v46, %v166
    %v168 = vpop.f32.mrb[0].mxu0
    %v169 = vpop.f32.mrb[0].mxu0
    %v170 = vadd.f32 %v46, %v169
    %v171 = vpop.f32.mrb[0].mxu0
    %172 = vmatprep.mubr.bf16.mxu0 0
    %173 = vmatmul.mubr.bf16.gmra.mrb[0].mxu0 %v108
    %v174 = vpop.f32.mrb[0].mxu0
    %v175 = vadd.f32 %v46, %v174
    %v176 = vpop.f32.mrb[0].mxu0
    %v177 = vpop.f32.mrb[0].mxu0
    %v178 = vadd.f32 %v46, %v177
    %v179 = vpop.f32.mrb[0].mxu0
    %180 = vmatprep.mubr.bf16.mxu0 0
    %181 = vmatmul.mubr.bf16.gmra.mrb[0].mxu0 %v111
    %v182 = vpop.f32.mrb[0].mxu0
    %v183 = vadd.f32 %v46, %v182
    %v184 = vpop.f32.mrb[0].mxu0
    %v185 = vpop.f32.mrb[0].mxu0
    %v186 = vadd.f32 %v46, %v185
    %v187 = vpop.f32.mrb[0].mxu0
    %188 = vmatprep.mubr.bf16.mxu0 0
    %189 = vmatmul.mubr.bf16.gmra.mrb[0].mxu0 %v114
    %v190 = vpop.f32.mrb[0].mxu0
    %v191 = vadd.f32 %v46, %v190
    %v192 = vpop.f32.mrb[0].mxu0
    %v193 = vpop.f32.mrb[0].mxu0
    %v194 = vadd.f32 %v46, %v193
    %v195 = vpop.f32.mrb[0].mxu0
    %196 = vmatprep.mubr.bf16.mxu0 0
    %197 = vmatmul.mubr.bf16.gmra.mrb[0].mxu0 %v117
    %v198 = vpop.f32.mrb[0].mxu0
    %v199 = vadd.f32 %v46, %v198
    %v200 = vpop.f32.mrb[0].mxu0
    %v201 = vpop.f32.mrb[0].mxu0
    %v202 = vadd.f32 %v46, %v201
    %v203 = vpop.f32.mrb[0].mxu0
    %204 = vmatprep.mubr.bf16.mxu0 0
    %205 = vmatmul.mubr.bf16.gmra.mrb[0].mxu0 %v120
    %v206 = vpop.f32.mrb[0].mxu0
    %v207 = vadd.f32 %v46, %v206
    %v208 = vpop.f32.mrb[0].mxu0
    %v209 = vpop.f32.mrb[0].mxu0
    %v210 = vadd.f32 %v46, %v209
    %v211 = vpop.f32.mrb[0].mxu0
    %212 = vmatprep.mubr.bf16.mxu0 0
    %213 = vmatmul.mubr.bf16.gmra.mrb[0].mxu0 %v123
    %v214 = vpop.f32.mrb[0].mxu0
    %v215 = vadd.f32 %v46, %v214
    %v216 = vpop.f32.mrb[0].mxu0
    %v217 = vpop.f32.mrb[0].mxu0
    %v218 = vadd.f32 %v46, %v217
    %v219 = vpop.f32.mrb[0].mxu0
    %220 = vmatprep.mubr.bf16.mxu0 0
    %221 = vmatmul.mubr.bf16.gmra.mrb[0].mxu0 %v126
    %v222 = vpop.f32.mrb[0].mxu0
    %v223 = vadd.f32 %v46, %v222
    %v224 = vpop.f32.mrb[0].mxu0
    %v225 = vpop.f32.mrb[0].mxu0
    %v226 = vadd.f32 %v46, %v225
    %v227 = vpop.f32.mrb[0].mxu0
    %228 = vdwg.mxu0
    %v229 = vmax.f32 %v167, 0.0
    %v230 = vmax.f32 %v170, 0.0
    %v231 = vmax.f32 %v175, 0.0
    %v232 = vmax.f32 %v178, 0.0
    %v233 = vmax.f32 %v183, 0.0
    %v234 = vmax.f32 %v186, 0.0
    %v235 = vmax.f32 %v191, 0.0
    %v236 = vmax.f32 %v194, 0.0
    %v237 = vmax.f32 %v199, 0.0
    %v238 = vmax.f32 %v202, 0.0
    %v239 = vmax.f32 %v207, 0.0
    %v240 = vmax.f32 %v210, 0.0
    %v241 = vmax.f32 %v215, 0.0
    %v242 = vmax.f32 %v218, 0.0
    %v243 = vmax.f32 %v223, 0.0
    %v244 = vmax.f32 %v226, 0.0
    %v245 = vmul.f32 %v229, %v229
    %v246 = vmul.f32 %v230, %v230
    %v247 = vmul.f32 %v231, %v231
    %v248 = vmul.f32 %v232, %v232
    %v249 = vmul.f32 %v233, %v233
    %v250 = vmul.f32 %v234, %v234
    %v251 = vmul.f32 %v235, %v235
    %v252 = vmul.f32 %v236, %v236
    %v253 = vmul.f32 %v237, %v237
    %v254 = vmul.f32 %v238, %v238
    %v255 = vmul.f32 %v239, %v239
    %v256 = vmul.f32 %v240, %v240
    %v257 = vmul.f32 %v241, %v241
    %v258 = vmul.f32 %v242, %v242
    %v259 = vmul.f32 %v243, %v243
    %v260 = vmul.f32 %v244, %v244
    %s261 = scalar_lea.vmem %s0, 64
    %v262 = vld [vmem:[%s261] sm:$0xf]
    %v263 = vld [vmem:[%s261 + $0x4] sm:$0xf]
    %v264 = vld [vmem:[%s261 + $0x8] sm:$0xf]
    %v265 = vld [vmem:[%s261 + $0xc] sm:$0xf]
    %v266 = vld [vmem:[%s261 + $0x10] sm:$0xf]
    %v267 = vld [vmem:[%s261 + $0x14] sm:$0xf]
    %v268 = vld [vmem:[%s261 + $0x18] sm:$0xf]
    %v269 = vld [vmem:[%s261 + $0x1c] sm:$0xf]
    %v270 = vld [vmem:[%s261 + $0x20] sm:$0xf]
    %v271 = vld [vmem:[%s261 + $0x24] sm:$0xf]
    %v272 = vld [vmem:[%s261 + $0x28] sm:$0xf]
    %v273 = vld [vmem:[%s261 + $0x2c] sm:$0xf]
    %v274 = vld [vmem:[%s261 + $0x30] sm:$0xf]
    %v275 = vld [vmem:[%s261 + $0x34] sm:$0xf]
    %v276 = vld [vmem:[%s261 + $0x38] sm:$0xf]
    %v277 = vld [vmem:[%s261 + $0x3c] sm:$0xf]
    %v294 = vunpack.c.l.b16 %v262
    %v295 = vunpack.c.l.b16 %v263
    %v296 = vunpack.c.l.b16 %v264
    %v297 = vunpack.c.l.b16 %v265
    %v298 = vunpack.c.l.b16 %v266
    %v299 = vunpack.c.l.b16 %v267
    %v300 = vunpack.c.l.b16 %v268
    %v301 = vunpack.c.l.b16 %v269
    %v302 = vunpack.c.l.b16 %v270
    %v303 = vunpack.c.l.b16 %v271
    %v304 = vunpack.c.l.b16 %v272
    %v305 = vunpack.c.l.b16 %v273
    %v306 = vunpack.c.l.b16 %v274
    %v307 = vunpack.c.l.b16 %v275
    %v308 = vunpack.c.l.b16 %v276
    %v309 = vunpack.c.l.b16 %v277
    %v310 = vpack.c.b16 %v295, %v294
    %v311 = vpack.c.b16 %v297, %v296
    %v312 = vpack.c.b16 %v299, %v298
    %v313 = vpack.c.b16 %v301, %v300
    %v314 = vpack.c.b16 %v303, %v302
    %v315 = vpack.c.b16 %v305, %v304
    %v316 = vpack.c.b16 %v307, %v306
    %v317 = vpack.c.b16 %v309, %v308
    %v319 = vsel %vm103, %v310, 0
    %v322 = vsel %vm103, %v311, 0
    %v325 = vsel %vm103, %v312, 0
    %v328 = vsel %vm103, %v313, 0
    %v331 = vsel %vm103, %v314, 0
    %v334 = vsel %vm103, %v315, 0
    %v337 = vsel %vm103, %v316, 0
    %v340 = vsel %vm103, %v317, 0
    %342 = vmatprep.subr.bf16.mxu0 0
    %343 = vmatpush1.bf16.msra.mxu0 %v98
    %344 = vmatprep.subr.bf16.mxu0 0
    %345 = vmatpush1.bf16.msra.mxu0 %v99
    %346 = vmatprep.subr.bf16.mxu0 0
    %347 = vmatpush1.bf16.msra.mxu0 %v130
    %348 = vmatprep.subr.bf16.mxu0 0
    %349 = vmatpush1.bf16.msra.mxu0 0
    %350 = vmatprep.subr.bf16.mxu0 0
    %351 = vmatpush1.bf16.msra.mxu0 0
    %352 = vmatprep.subr.bf16.mxu0 0
    %353 = vmatpush1.bf16.msra.mxu0 0
    %354 = vmatprep.subr.bf16.mxu0 0
    %355 = vmatpush1.bf16.msra.mxu0 0
    %356 = vmatprep.subr.bf16.mxu0 0
    %357 = vmatpush1.bf16.msra.mxu0 0
    %358 = vmatprep.subr.bf16.mxu0 0
    %359 = vmatpush1.bf16.msra.mxu0 0
    %360 = vmatprep.subr.bf16.mxu0 0
    %361 = vmatpush1.bf16.msra.mxu0 0
    %362 = vmatprep.subr.bf16.mxu0 0
    %363 = vmatpush1.bf16.msra.mxu0 0
    %364 = vmatprep.subr.bf16.mxu0 0
    %365 = vmatpush1.bf16.msra.mxu0 0
    %366 = vmatprep.subr.bf16.mxu0 0
    %367 = vmatpush1.bf16.msra.mxu0 0
    %368 = vmatprep.subr.bf16.mxu0 0
    %369 = vmatpush1.bf16.msra.mxu0 0
    %370 = vmatprep.subr.bf16.mxu0 0
    %371 = vmatpush1.bf16.msra.mxu0 0
    %372 = vmatprep.subr.bf16.mxu0 0
    %373 = vmatpush1.bf16.msra.mxu0 0
    %374 = vmatprep.mubr.bf16.mxu0 0
    %375 = vmatmul.mubr.bf16.gmra.mrb[0].mxu0 %v319
    %v376 = vpop.f32.mrb[0].mxu0
    %v377 = vadd.f32 %v46, %v376
    %v378 = vpop.f32.mrb[0].mxu0
    %v379 = vpop.f32.mrb[0].mxu0
    %v380 = vadd.f32 %v46, %v379
    %v381 = vpop.f32.mrb[0].mxu0
    %382 = vmatprep.mubr.bf16.mxu0 0
    %383 = vmatmul.mubr.bf16.gmra.mrb[0].mxu0 %v322
    %v384 = vpop.f32.mrb[0].mxu0
    %v385 = vadd.f32 %v46, %v384
    %v386 = vpop.f32.mrb[0].mxu0
    %v387 = vpop.f32.mrb[0].mxu0
    %v388 = vadd.f32 %v46, %v387
    %v389 = vpop.f32.mrb[0].mxu0
    %390 = vmatprep.mubr.bf16.mxu0 0
    %391 = vmatmul.mubr.bf16.gmra.mrb[0].mxu0 %v325
    %v392 = vpop.f32.mrb[0].mxu0
    %v393 = vadd.f32 %v46, %v392
    %v394 = vpop.f32.mrb[0].mxu0
    %v395 = vpop.f32.mrb[0].mxu0
    %v396 = vadd.f32 %v46, %v395
    %v397 = vpop.f32.mrb[0].mxu0
    %398 = vmatprep.mubr.bf16.mxu0 0
    %399 = vmatmul.mubr.bf16.gmra.mrb[0].mxu0 %v328
    %v400 = vpop.f32.mrb[0].mxu0
    %v401 = vadd.f32 %v46, %v400
    %v402 = vpop.f32.mrb[0].mxu0
    %v403 = vpop.f32.mrb[0].mxu0
    %v404 = vadd.f32 %v46, %v403
    %v405 = vpop.f32.mrb[0].mxu0
    %406 = vmatprep.mubr.bf16.mxu0 0
    %407 = vmatmul.mubr.bf16.gmra.mrb[0].mxu0 %v331
    %v408 = vpop.f32.mrb[0].mxu0
    %v409 = vadd.f32 %v46, %v408
    %v410 = vpop.f32.mrb[0].mxu0
    %v411 = vpop.f32.mrb[0].mxu0
    %v412 = vadd.f32 %v46, %v411
    %v413 = vpop.f32.mrb[0].mxu0
    %414 = vmatprep.mubr.bf16.mxu0 0
    %415 = vmatmul.mubr.bf16.gmra.mrb[0].mxu0 %v334
    %v416 = vpop.f32.mrb[0].mxu0
    %v417 = vadd.f32 %v46, %v416
    %v418 = vpop.f32.mrb[0].mxu0
    %v419 = vpop.f32.mrb[0].mxu0
    %v420 = vadd.f32 %v46, %v419
    %v421 = vpop.f32.mrb[0].mxu0
    %422 = vmatprep.mubr.bf16.mxu0 0
    %423 = vmatmul.mubr.bf16.gmra.mrb[0].mxu0 %v337
    %v424 = vpop.f32.mrb[0].mxu0
    %v425 = vadd.f32 %v46, %v424
    %v426 = vpop.f32.mrb[0].mxu0
    %v427 = vpop.f32.mrb[0].mxu0
    %v428 = vadd.f32 %v46, %v427
    %v429 = vpop.f32.mrb[0].mxu0
    %430 = vmatprep.mubr.bf16.mxu0 0
    %431 = vmatmul.mubr.bf16.gmra.mrb[0].mxu0 %v340
    %v432 = vpop.f32.mrb[0].mxu0
    %v433 = vadd.f32 %v46, %v432
    %v434 = vpop.f32.mrb[0].mxu0
    %v435 = vpop.f32.mrb[0].mxu0
    %v436 = vadd.f32 %v46, %v435
    %v437 = vpop.f32.mrb[0].mxu0
    %438 = vdwg.mxu0
    %v439 = vmax.f32 %v377, 0.0
    %v440 = vmax.f32 %v380, 0.0
    %v441 = vmax.f32 %v385, 0.0
    %v442 = vmax.f32 %v388, 0.0
    %v443 = vmax.f32 %v393, 0.0
    %v444 = vmax.f32 %v396, 0.0
    %v445 = vmax.f32 %v401, 0.0
    %v446 = vmax.f32 %v404, 0.0
    %v447 = vmax.f32 %v409, 0.0
    %v448 = vmax.f32 %v412, 0.0
    %v449 = vmax.f32 %v417, 0.0
    %v450 = vmax.f32 %v420, 0.0
    %v451 = vmax.f32 %v425, 0.0
    %v452 = vmax.f32 %v428, 0.0
    %v453 = vmax.f32 %v433, 0.0
    %v454 = vmax.f32 %v436, 0.0
    %v455 = vmax.f32 %v229, %v439
    %v456 = vmax.f32 %v230, %v440
    %v457 = vmax.f32 %v231, %v441
    %v458 = vmax.f32 %v232, %v442
    %v459 = vmax.f32 %v233, %v443
    %v460 = vmax.f32 %v234, %v444
    %v461 = vmax.f32 %v235, %v445
    %v462 = vmax.f32 %v236, %v446
    %v463 = vmax.f32 %v237, %v447
    %v464 = vmax.f32 %v238, %v448
    %v465 = vmax.f32 %v239, %v449
    %v466 = vmax.f32 %v240, %v450
    %v467 = vmax.f32 %v241, %v451
    %v468 = vmax.f32 %v242, %v452
    %v469 = vmax.f32 %v243, %v453
    %v470 = vmax.f32 %v244, %v454
    %v471 = vmin.f32 %v229, %v439
    %v472 = vmin.f32 %v230, %v440
    %v473 = vmin.f32 %v231, %v441
    %v474 = vmin.f32 %v232, %v442
    %v475 = vmin.f32 %v233, %v443
    %v476 = vmin.f32 %v234, %v444
    %v477 = vmin.f32 %v235, %v445
    %v478 = vmin.f32 %v236, %v446
    %v479 = vmin.f32 %v237, %v447
    %v480 = vmin.f32 %v238, %v448
    %v481 = vmin.f32 %v239, %v449
    %v482 = vmin.f32 %v240, %v450
    %v483 = vmin.f32 %v241, %v451
    %v484 = vmin.f32 %v242, %v452
    %v485 = vmin.f32 %v243, %v453
    %v486 = vmin.f32 %v244, %v454
    %v487 = vadd.f32 %v229, %v439
    %v488 = vadd.f32 %v230, %v440
    %v489 = vadd.f32 %v231, %v441
    %v490 = vadd.f32 %v232, %v442
    %v491 = vadd.f32 %v233, %v443
    %v492 = vadd.f32 %v234, %v444
    %v493 = vadd.f32 %v235, %v445
    %v494 = vadd.f32 %v236, %v446
    %v495 = vadd.f32 %v237, %v447
    %v496 = vadd.f32 %v238, %v448
    %v497 = vadd.f32 %v239, %v449
    %v498 = vadd.f32 %v240, %v450
    %v499 = vadd.f32 %v241, %v451
    %v500 = vadd.f32 %v242, %v452
    %v501 = vadd.f32 %v243, %v453
    %v502 = vadd.f32 %v244, %v454
    %v503 = vmul.f32 %v439, %v439
    %v504 = vmul.f32 %v440, %v440
    %v505 = vmul.f32 %v441, %v441
    %v506 = vmul.f32 %v442, %v442
    %v507 = vmul.f32 %v443, %v443
    %v508 = vmul.f32 %v444, %v444
    %v509 = vmul.f32 %v445, %v445
    %v510 = vmul.f32 %v446, %v446
    %v511 = vmul.f32 %v447, %v447
    %v512 = vmul.f32 %v448, %v448
    %v513 = vmul.f32 %v449, %v449
    %v514 = vmul.f32 %v450, %v450
    %v515 = vmul.f32 %v451, %v451
    %v516 = vmul.f32 %v452, %v452
    %v517 = vmul.f32 %v453, %v453
    %v518 = vmul.f32 %v454, %v454
    %v519 = vadd.f32 %v245, %v503
    %v520 = vadd.f32 %v246, %v504
    %v521 = vadd.f32 %v247, %v505
    %v522 = vadd.f32 %v248, %v506
    %v523 = vadd.f32 %v249, %v507
    %v524 = vadd.f32 %v250, %v508
    %v525 = vadd.f32 %v251, %v509
    %v526 = vadd.f32 %v252, %v510
    %v527 = vadd.f32 %v253, %v511
    %v528 = vadd.f32 %v254, %v512
    %v529 = vadd.f32 %v255, %v513
    %v530 = vadd.f32 %v256, %v514
    %v531 = vadd.f32 %v257, %v515
    %v532 = vadd.f32 %v258, %v516
    %v533 = vadd.f32 %v259, %v517
    %v534 = vadd.f32 %v260, %v518
    %s535 = scalar_lea.vmem %s0, 128
    %v536 = vld [vmem:[%s535] sm:$0xf]
    %v537 = vld [vmem:[%s535 + $0x4] sm:$0xf]
    %v538 = vld [vmem:[%s535 + $0x8] sm:$0xf]
    %v539 = vld [vmem:[%s535 + $0xc] sm:$0xf]
    %v540 = vld [vmem:[%s535 + $0x10] sm:$0xf]
    %v541 = vld [vmem:[%s535 + $0x14] sm:$0xf]
    %v542 = vld [vmem:[%s535 + $0x18] sm:$0xf]
    %v543 = vld [vmem:[%s535 + $0x1c] sm:$0xf]
    %v544 = vld [vmem:[%s535 + $0x20] sm:$0xf]
    %v545 = vld [vmem:[%s535 + $0x24] sm:$0xf]
    %v546 = vld [vmem:[%s535 + $0x28] sm:$0xf]
    %v547 = vld [vmem:[%s535 + $0x2c] sm:$0xf]
    %v548 = vld [vmem:[%s535 + $0x30] sm:$0xf]
    %v549 = vld [vmem:[%s535 + $0x34] sm:$0xf]
    %v550 = vld [vmem:[%s535 + $0x38] sm:$0xf]
    %v551 = vld [vmem:[%s535 + $0x3c] sm:$0xf]
    %v568 = vunpack.c.l.b16 %v536
    %v569 = vunpack.c.l.b16 %v537
    %v570 = vunpack.c.l.b16 %v538
    %v571 = vunpack.c.l.b16 %v539
    %v572 = vunpack.c.l.b16 %v540
    %v573 = vunpack.c.l.b16 %v541
    %v574 = vunpack.c.l.b16 %v542
    %v575 = vunpack.c.l.b16 %v543
    %v576 = vunpack.c.l.b16 %v544
    %v577 = vunpack.c.l.b16 %v545
    %v578 = vunpack.c.l.b16 %v546
    %v579 = vunpack.c.l.b16 %v547
    %v580 = vunpack.c.l.b16 %v548
    %v581 = vunpack.c.l.b16 %v549
    %v582 = vunpack.c.l.b16 %v550
    %v583 = vunpack.c.l.b16 %v551
    %v584 = vpack.c.b16 %v569, %v568
    %v585 = vpack.c.b16 %v571, %v570
    %v586 = vpack.c.b16 %v573, %v572
    %v587 = vpack.c.b16 %v575, %v574
    %v588 = vpack.c.b16 %v577, %v576
    %v589 = vpack.c.b16 %v579, %v578
    %v590 = vpack.c.b16 %v581, %v580
    %v591 = vpack.c.b16 %v583, %v582
    %v593 = vsel %vm103, %v584, 0
    %v596 = vsel %vm103, %v585, 0
    %v599 = vsel %vm103, %v586, 0
    %v602 = vsel %vm103, %v587, 0
    %v605 = vsel %vm103, %v588, 0
    %v608 = vsel %vm103, %v589, 0
    %v611 = vsel %vm103, %v590, 0
    %v614 = vsel %vm103, %v591, 0
    %616 = vmatprep.subr.bf16.mxu0 0
    %617 = vmatpush1.bf16.msra.mxu0 %v98
    %618 = vmatprep.subr.bf16.mxu0 0
    %619 = vmatpush1.bf16.msra.mxu0 %v99
    %620 = vmatprep.subr.bf16.mxu0 0
    %621 = vmatpush1.bf16.msra.mxu0 %v130
    %622 = vmatprep.subr.bf16.mxu0 0
    %623 = vmatpush1.bf16.msra.mxu0 0
    %624 = vmatprep.subr.bf16.mxu0 0
    %625 = vmatpush1.bf16.msra.mxu0 0
    %626 = vmatprep.subr.bf16.mxu0 0
    %627 = vmatpush1.bf16.msra.mxu0 0
    %628 = vmatprep.subr.bf16.mxu0 0
    %629 = vmatpush1.bf16.msra.mxu0 0
    %630 = vmatprep.subr.bf16.mxu0 0
    %631 = vmatpush1.bf16.msra.mxu0 0
    %632 = vmatprep.subr.bf16.mxu0 0
    %633 = vmatpush1.bf16.msra.mxu0 0
    %634 = vmatprep.subr.bf16.mxu0 0
    %635 = vmatpush1.bf16.msra.mxu0 0
    %636 = vmatprep.subr.bf16.mxu0 0
    %637 = vmatpush1.bf16.msra.mxu0 0
    %638 = vmatprep.subr.bf16.mxu0 0
    %639 = vmatpush1.bf16.msra.mxu0 0
    %640 = vmatprep.subr.bf16.mxu0 0
    %641 = vmatpush1.bf16.msra.mxu0 0
    %642 = vmatprep.subr.bf16.mxu0 0
    %643 = vmatpush1.bf16.msra.mxu0 0
    %644 = vmatprep.subr.bf16.mxu0 0
    %645 = vmatpush1.bf16.msra.mxu0 0
    %646 = vmatprep.subr.bf16.mxu0 0
    %647 = vmatpush1.bf16.msra.mxu0 0
    %648 = vmatprep.mubr.bf16.mxu0 0
    %649 = vmatmul.mubr.bf16.gmra.mrb[0].mxu0 %v593
    %v650 = vpop.f32.mrb[0].mxu0
    %v651 = vadd.f32 %v46, %v650
    %v652 = vpop.f32.mrb[0].mxu0
    %v653 = vpop.f32.mrb[0].mxu0
    %v654 = vadd.f32 %v46, %v653
    %v655 = vpop.f32.mrb[0].mxu0
    %656 = vmatprep.mubr.bf16.mxu0 0
    %657 = vmatmul.mubr.bf16.gmra.mrb[0].mxu0 %v596
    %v658 = vpop.f32.mrb[0].mxu0
    %v659 = vadd.f32 %v46, %v658
    %v660 = vpop.f32.mrb[0].mxu0
    %v661 = vpop.f32.mrb[0].mxu0
    %v662 = vadd.f32 %v46, %v661
    %v663 = vpop.f32.mrb[0].mxu0
    %664 = vmatprep.mubr.bf16.mxu0 0
    %665 = vmatmul.mubr.bf16.gmra.mrb[0].mxu0 %v599
    %v666 = vpop.f32.mrb[0].mxu0
    %v667 = vadd.f32 %v46, %v666
    %v668 = vpop.f32.mrb[0].mxu0
    %v669 = vpop.f32.mrb[0].mxu0
    %v670 = vadd.f32 %v46, %v669
    %v671 = vpop.f32.mrb[0].mxu0
    %672 = vmatprep.mubr.bf16.mxu0 0
    %673 = vmatmul.mubr.bf16.gmra.mrb[0].mxu0 %v602
    %v674 = vpop.f32.mrb[0].mxu0
    %v675 = vadd.f32 %v46, %v674
    %v676 = vpop.f32.mrb[0].mxu0
    %v677 = vpop.f32.mrb[0].mxu0
    %v678 = vadd.f32 %v46, %v677
    %v679 = vpop.f32.mrb[0].mxu0
    %680 = vmatprep.mubr.bf16.mxu0 0
    %681 = vmatmul.mubr.bf16.gmra.mrb[0].mxu0 %v605
    %v682 = vpop.f32.mrb[0].mxu0
    %v683 = vadd.f32 %v46, %v682
    %v684 = vpop.f32.mrb[0].mxu0
    %v685 = vpop.f32.mrb[0].mxu0
    %v686 = vadd.f32 %v46, %v685
    %v687 = vpop.f32.mrb[0].mxu0
    %688 = vmatprep.mubr.bf16.mxu0 0
    %689 = vmatmul.mubr.bf16.gmra.mrb[0].mxu0 %v608
    %v690 = vpop.f32.mrb[0].mxu0
    %v691 = vadd.f32 %v46, %v690
    %v692 = vpop.f32.mrb[0].mxu0
    %v693 = vpop.f32.mrb[0].mxu0
    %v694 = vadd.f32 %v46, %v693
    %v695 = vpop.f32.mrb[0].mxu0
    %696 = vmatprep.mubr.bf16.mxu0 0
    %697 = vmatmul.mubr.bf16.gmra.mrb[0].mxu0 %v611
    %v698 = vpop.f32.mrb[0].mxu0
    %v699 = vadd.f32 %v46, %v698
    %v700 = vpop.f32.mrb[0].mxu0
    %v701 = vpop.f32.mrb[0].mxu0
    %v702 = vadd.f32 %v46, %v701
    %v703 = vpop.f32.mrb[0].mxu0
    %704 = vmatprep.mubr.bf16.mxu0 0
    %705 = vmatmul.mubr.bf16.gmra.mrb[0].mxu0 %v614
    %v706 = vpop.f32.mrb[0].mxu0
    %v707 = vadd.f32 %v46, %v706
    %v708 = vpop.f32.mrb[0].mxu0
    %v709 = vpop.f32.mrb[0].mxu0
    %v710 = vadd.f32 %v46, %v709
    %v711 = vpop.f32.mrb[0].mxu0
    %712 = vdwg.mxu0
    %v713 = vmax.f32 %v651, 0.0
    %v714 = vmax.f32 %v654, 0.0
    %v715 = vmax.f32 %v659, 0.0
    %v716 = vmax.f32 %v662, 0.0
    %v717 = vmax.f32 %v667, 0.0
    %v718 = vmax.f32 %v670, 0.0
    %v719 = vmax.f32 %v675, 0.0
    %v720 = vmax.f32 %v678, 0.0
    %v721 = vmax.f32 %v683, 0.0
    %v722 = vmax.f32 %v686, 0.0
    %v723 = vmax.f32 %v691, 0.0
    %v724 = vmax.f32 %v694, 0.0
    %v725 = vmax.f32 %v699, 0.0
    %v726 = vmax.f32 %v702, 0.0
    %v727 = vmax.f32 %v707, 0.0
    %v728 = vmax.f32 %v710, 0.0
    %v729 = vmax.f32 %v455, %v713
    %v730 = vmax.f32 %v456, %v714
    %v731 = vmax.f32 %v457, %v715
    %v732 = vmax.f32 %v458, %v716
    %v733 = vmax.f32 %v459, %v717
    %v734 = vmax.f32 %v460, %v718
    %v735 = vmax.f32 %v461, %v719
    %v736 = vmax.f32 %v462, %v720
    %v737 = vmax.f32 %v463, %v721
    %v738 = vmax.f32 %v464, %v722
    %v739 = vmax.f32 %v465, %v723
    %v740 = vmax.f32 %v466, %v724
    %v741 = vmax.f32 %v467, %v725
    %v742 = vmax.f32 %v468, %v726
    %v743 = vmax.f32 %v469, %v727
    %v744 = vmax.f32 %v470, %v728
    %v745 = vmin.f32 %v471, %v713
    %v746 = vmin.f32 %v472, %v714
    %v747 = vmin.f32 %v473, %v715
    %v748 = vmin.f32 %v474, %v716
    %v749 = vmin.f32 %v475, %v717
    %v750 = vmin.f32 %v476, %v718
    %v751 = vmin.f32 %v477, %v719
    %v752 = vmin.f32 %v478, %v720
    %v753 = vmin.f32 %v479, %v721
    %v754 = vmin.f32 %v480, %v722
    %v755 = vmin.f32 %v481, %v723
    %v756 = vmin.f32 %v482, %v724
    %v757 = vmin.f32 %v483, %v725
    %v758 = vmin.f32 %v484, %v726
    %v759 = vmin.f32 %v485, %v727
    %v760 = vmin.f32 %v486, %v728
    %v761 = vadd.f32 %v487, %v713
    %v762 = vadd.f32 %v488, %v714
    %v763 = vadd.f32 %v489, %v715
    %v764 = vadd.f32 %v490, %v716
    %v765 = vadd.f32 %v491, %v717
    %v766 = vadd.f32 %v492, %v718
    %v767 = vadd.f32 %v493, %v719
    %v768 = vadd.f32 %v494, %v720
    %v769 = vadd.f32 %v495, %v721
    %v770 = vadd.f32 %v496, %v722
    %v771 = vadd.f32 %v497, %v723
    %v772 = vadd.f32 %v498, %v724
    %v773 = vadd.f32 %v499, %v725
    %v774 = vadd.f32 %v500, %v726
    %v775 = vadd.f32 %v501, %v727
    %v776 = vadd.f32 %v502, %v728
    %v777 = vmul.f32 %v713, %v713
    %v778 = vmul.f32 %v714, %v714
    %v779 = vmul.f32 %v715, %v715
    %v780 = vmul.f32 %v716, %v716
    %v781 = vmul.f32 %v717, %v717
    %v782 = vmul.f32 %v718, %v718
    %v783 = vmul.f32 %v719, %v719
    %v784 = vmul.f32 %v720, %v720
    %v785 = vmul.f32 %v721, %v721
    %v786 = vmul.f32 %v722, %v722
    %v787 = vmul.f32 %v723, %v723
    %v788 = vmul.f32 %v724, %v724
    %v789 = vmul.f32 %v725, %v725
    %v790 = vmul.f32 %v726, %v726
    %v791 = vmul.f32 %v727, %v727
    %v792 = vmul.f32 %v728, %v728
    %v793 = vadd.f32 %v519, %v777
    %v794 = vadd.f32 %v520, %v778
    %v795 = vadd.f32 %v521, %v779
    %v796 = vadd.f32 %v522, %v780
    %v797 = vadd.f32 %v523, %v781
    %v798 = vadd.f32 %v524, %v782
    %v799 = vadd.f32 %v525, %v783
    %v800 = vadd.f32 %v526, %v784
    %v801 = vadd.f32 %v527, %v785
    %v802 = vadd.f32 %v528, %v786
    %v803 = vadd.f32 %v529, %v787
    %v804 = vadd.f32 %v530, %v788
    %v805 = vadd.f32 %v531, %v789
    %v806 = vadd.f32 %v532, %v790
    %v807 = vadd.f32 %v533, %v791
    %v808 = vadd.f32 %v534, %v792
    %s809 = scalar_lea.vmem %s0, 192
    %v810 = vld [vmem:[%s809] sm:$0xf]
    %v811 = vld [vmem:[%s809 + $0x4] sm:$0xf]
    %v812 = vld [vmem:[%s809 + $0x8] sm:$0xf]
    %v813 = vld [vmem:[%s809 + $0xc] sm:$0xf]
    %v814 = vld [vmem:[%s809 + $0x10] sm:$0xf]
    %v815 = vld [vmem:[%s809 + $0x14] sm:$0xf]
    %v816 = vld [vmem:[%s809 + $0x18] sm:$0xf]
    %v817 = vld [vmem:[%s809 + $0x1c] sm:$0xf]
    %v818 = vld [vmem:[%s809 + $0x20] sm:$0xf]
    %v819 = vld [vmem:[%s809 + $0x24] sm:$0xf]
    %v820 = vld [vmem:[%s809 + $0x28] sm:$0xf]
    %v821 = vld [vmem:[%s809 + $0x2c] sm:$0xf]
    %v822 = vld [vmem:[%s809 + $0x30] sm:$0xf]
    %v823 = vld [vmem:[%s809 + $0x34] sm:$0xf]
    %v824 = vld [vmem:[%s809 + $0x38] sm:$0xf]
    %v825 = vld [vmem:[%s809 + $0x3c] sm:$0xf]
    %v842 = vunpack.c.l.b16 %v810
    %v843 = vunpack.c.l.b16 %v811
    %v844 = vunpack.c.l.b16 %v812
    %v845 = vunpack.c.l.b16 %v813
    %v846 = vunpack.c.l.b16 %v814
    %v847 = vunpack.c.l.b16 %v815
    %v848 = vunpack.c.l.b16 %v816
    %v849 = vunpack.c.l.b16 %v817
    %v850 = vunpack.c.l.b16 %v818
    %v851 = vunpack.c.l.b16 %v819
    %v852 = vunpack.c.l.b16 %v820
    %v853 = vunpack.c.l.b16 %v821
    %v854 = vunpack.c.l.b16 %v822
    %v855 = vunpack.c.l.b16 %v823
    %v856 = vunpack.c.l.b16 %v824
    %v857 = vunpack.c.l.b16 %v825
    %v858 = vpack.c.b16 %v843, %v842
    %v859 = vpack.c.b16 %v845, %v844
    %v860 = vpack.c.b16 %v847, %v846
    %v861 = vpack.c.b16 %v849, %v848
    %v862 = vpack.c.b16 %v851, %v850
    %v863 = vpack.c.b16 %v853, %v852
    %v864 = vpack.c.b16 %v855, %v854
    %v865 = vpack.c.b16 %v857, %v856
    %v867 = vsel %vm103, %v858, 0
    %v870 = vsel %vm103, %v859, 0
    %v873 = vsel %vm103, %v860, 0
    %v876 = vsel %vm103, %v861, 0
    %v879 = vsel %vm103, %v862, 0
    %v882 = vsel %vm103, %v863, 0
    %v885 = vsel %vm103, %v864, 0
    %v888 = vsel %vm103, %v865, 0
    %890 = vmatprep.subr.bf16.mxu0 0
    %891 = vmatpush1.bf16.msra.mxu0 %v98
    %892 = vmatprep.subr.bf16.mxu0 0
    %893 = vmatpush1.bf16.msra.mxu0 %v99
    %894 = vmatprep.subr.bf16.mxu0 0
    %895 = vmatpush1.bf16.msra.mxu0 %v130
    %896 = vmatprep.subr.bf16.mxu0 0
    %897 = vmatpush1.bf16.msra.mxu0 0
    %898 = vmatprep.subr.bf16.mxu0 0
    %899 = vmatpush1.bf16.msra.mxu0 0
    %900 = vmatprep.subr.bf16.mxu0 0
    %901 = vmatpush1.bf16.msra.mxu0 0
    %902 = vmatprep.subr.bf16.mxu0 0
    %903 = vmatpush1.bf16.msra.mxu0 0
    %904 = vmatprep.subr.bf16.mxu0 0
    %905 = vmatpush1.bf16.msra.mxu0 0
    %906 = vmatprep.subr.bf16.mxu0 0
    %907 = vmatpush1.bf16.msra.mxu0 0
    %908 = vmatprep.subr.bf16.mxu0 0
    %909 = vmatpush1.bf16.msra.mxu0 0
    %910 = vmatprep.subr.bf16.mxu0 0
    %911 = vmatpush1.bf16.msra.mxu0 0
    %912 = vmatprep.subr.bf16.mxu0 0
    %913 = vmatpush1.bf16.msra.mxu0 0
    %914 = vmatprep.subr.bf16.mxu0 0
    %915 = vmatpush1.bf16.msra.mxu0 0
    %916 = vmatprep.subr.bf16.mxu0 0
    %917 = vmatpush1.bf16.msra.mxu0 0
    %918 = vmatprep.subr.bf16.mxu0 0
    %919 = vmatpush1.bf16.msra.mxu0 0
    %920 = vmatprep.subr.bf16.mxu0 0
    %921 = vmatpush1.bf16.msra.mxu0 0
    %922 = vmatprep.mubr.bf16.mxu0 0
    %923 = vmatmul.mubr.bf16.gmra.mrb[0].mxu0 %v867
    %v924 = vpop.f32.mrb[0].mxu0
    %v925 = vadd.f32 %v46, %v924
    %v926 = vpop.f32.mrb[0].mxu0
    %v927 = vpop.f32.mrb[0].mxu0
    %v928 = vadd.f32 %v46, %v927
    %v929 = vpop.f32.mrb[0].mxu0
    %930 = vmatprep.mubr.bf16.mxu0 0
    %931 = vmatmul.mubr.bf16.gmra.mrb[0].mxu0 %v870
    %v932 = vpop.f32.mrb[0].mxu0
    %v933 = vadd.f32 %v46, %v932
    %v934 = vpop.f32.mrb[0].mxu0
    %v935 = vpop.f32.mrb[0].mxu0
    %v936 = vadd.f32 %v46, %v935
    %v937 = vpop.f32.mrb[0].mxu0
    %938 = vmatprep.mubr.bf16.mxu0 0
    %939 = vmatmul.mubr.bf16.gmra.mrb[0].mxu0 %v873
    %v940 = vpop.f32.mrb[0].mxu0
    %v941 = vadd.f32 %v46, %v940
    %v942 = vpop.f32.mrb[0].mxu0
    %v943 = vpop.f32.mrb[0].mxu0
    %v944 = vadd.f32 %v46, %v943
    %v945 = vpop.f32.mrb[0].mxu0
    %946 = vmatprep.mubr.bf16.mxu0 0
    %947 = vmatmul.mubr.bf16.gmra.mrb[0].mxu0 %v876
    %v948 = vpop.f32.mrb[0].mxu0
    %v949 = vadd.f32 %v46, %v948
    %v950 = vpop.f32.mrb[0].mxu0
    %v951 = vpop.f32.mrb[0].mxu0
    %v952 = vadd.f32 %v46, %v951
    %v953 = vpop.f32.mrb[0].mxu0
    %954 = vmatprep.mubr.bf16.mxu0 0
    %955 = vmatmul.mubr.bf16.gmra.mrb[0].mxu0 %v879
    %v956 = vpop.f32.mrb[0].mxu0
    %v957 = vadd.f32 %v46, %v956
    %v958 = vpop.f32.mrb[0].mxu0
    %v959 = vpop.f32.mrb[0].mxu0
    %v960 = vadd.f32 %v46, %v959
    %v961 = vpop.f32.mrb[0].mxu0
    %962 = vmatprep.mubr.bf16.mxu0 0
    %963 = vmatmul.mubr.bf16.gmra.mrb[0].mxu0 %v882
    %v964 = vpop.f32.mrb[0].mxu0
    %v965 = vadd.f32 %v46, %v964
    %v966 = vpop.f32.mrb[0].mxu0
    %v967 = vpop.f32.mrb[0].mxu0
    %v968 = vadd.f32 %v46, %v967
    %v969 = vpop.f32.mrb[0].mxu0
    %970 = vmatprep.mubr.bf16.mxu0 0
    %971 = vmatmul.mubr.bf16.gmra.mrb[0].mxu0 %v885
    %v972 = vpop.f32.mrb[0].mxu0
    %v973 = vadd.f32 %v46, %v972
    %v974 = vpop.f32.mrb[0].mxu0
    %v975 = vpop.f32.mrb[0].mxu0
    %v976 = vadd.f32 %v46, %v975
    %v977 = vpop.f32.mrb[0].mxu0
    %978 = vmatprep.mubr.bf16.mxu0 0
    %979 = vmatmul.mubr.bf16.gmra.mrb[0].mxu0 %v888
    %v980 = vpop.f32.mrb[0].mxu0
    %v981 = vadd.f32 %v46, %v980
    %v982 = vpop.f32.mrb[0].mxu0
    %v983 = vpop.f32.mrb[0].mxu0
    %v984 = vadd.f32 %v46, %v983
    %v985 = vpop.f32.mrb[0].mxu0
    %986 = vdwg.mxu0
    %v987 = vmax.f32 %v925, 0.0
    %v988 = vmax.f32 %v928, 0.0
    %v989 = vmax.f32 %v933, 0.0
    %v990 = vmax.f32 %v936, 0.0
    %v991 = vmax.f32 %v941, 0.0
    %v992 = vmax.f32 %v944, 0.0
    %v993 = vmax.f32 %v949, 0.0
    %v994 = vmax.f32 %v952, 0.0
    %v995 = vmax.f32 %v957, 0.0
    %v996 = vmax.f32 %v960, 0.0
    %v997 = vmax.f32 %v965, 0.0
    %v998 = vmax.f32 %v968, 0.0
    %v999 = vmax.f32 %v973, 0.0
    %v1000 = vmax.f32 %v976, 0.0
    %v1001 = vmax.f32 %v981, 0.0
    %v1002 = vmax.f32 %v984, 0.0
    %v1003 = vmax.f32 %v729, %v987
    %v1004 = vmax.f32 %v730, %v988
    %v1005 = vmax.f32 %v731, %v989
    %v1006 = vmax.f32 %v732, %v990
    %v1007 = vmax.f32 %v733, %v991
    %v1008 = vmax.f32 %v734, %v992
    %v1009 = vmax.f32 %v735, %v993
    %v1010 = vmax.f32 %v736, %v994
    %v1011 = vmax.f32 %v737, %v995
    %v1012 = vmax.f32 %v738, %v996
    %v1013 = vmax.f32 %v739, %v997
    %v1014 = vmax.f32 %v740, %v998
    %v1015 = vmax.f32 %v741, %v999
    %v1016 = vmax.f32 %v742, %v1000
    %v1017 = vmax.f32 %v743, %v1001
    %v1018 = vmax.f32 %v744, %v1002
    %v1019 = vmin.f32 %v745, %v987
    %v1020 = vmin.f32 %v746, %v988
    %v1021 = vmin.f32 %v747, %v989
    %v1022 = vmin.f32 %v748, %v990
    %v1023 = vmin.f32 %v749, %v991
    %v1024 = vmin.f32 %v750, %v992
    %v1025 = vmin.f32 %v751, %v993
    %v1026 = vmin.f32 %v752, %v994
    %v1027 = vmin.f32 %v753, %v995
    %v1028 = vmin.f32 %v754, %v996
    %v1029 = vmin.f32 %v755, %v997
    %v1030 = vmin.f32 %v756, %v998
    %v1031 = vmin.f32 %v757, %v999
    %v1032 = vmin.f32 %v758, %v1000
    %v1033 = vmin.f32 %v759, %v1001
    %v1034 = vmin.f32 %v760, %v1002
    %v1035 = vadd.f32 %v761, %v987
    %v1036 = vadd.f32 %v762, %v988
    %v1037 = vadd.f32 %v763, %v989
    %v1038 = vadd.f32 %v764, %v990
    %v1039 = vadd.f32 %v765, %v991
    %v1040 = vadd.f32 %v766, %v992
    %v1041 = vadd.f32 %v767, %v993
    %v1042 = vadd.f32 %v768, %v994
    %v1043 = vadd.f32 %v769, %v995
    %v1044 = vadd.f32 %v770, %v996
    %v1045 = vadd.f32 %v771, %v997
    %v1046 = vadd.f32 %v772, %v998
    %v1047 = vadd.f32 %v773, %v999
    %v1048 = vadd.f32 %v774, %v1000
    %v1049 = vadd.f32 %v775, %v1001
    %v1050 = vadd.f32 %v776, %v1002
    %v1051 = vmul.f32 %v987, %v987
    %v1052 = vmul.f32 %v988, %v988
    %v1053 = vmul.f32 %v989, %v989
    %v1054 = vmul.f32 %v990, %v990
    %v1055 = vmul.f32 %v991, %v991
    %v1056 = vmul.f32 %v992, %v992
    %v1057 = vmul.f32 %v993, %v993
    %v1058 = vmul.f32 %v994, %v994
    %v1059 = vmul.f32 %v995, %v995
    %v1060 = vmul.f32 %v996, %v996
    %v1061 = vmul.f32 %v997, %v997
    %v1062 = vmul.f32 %v998, %v998
    %v1063 = vmul.f32 %v999, %v999
    %v1064 = vmul.f32 %v1000, %v1000
    %v1065 = vmul.f32 %v1001, %v1001
    %v1066 = vmul.f32 %v1002, %v1002
    %v1067 = vadd.f32 %v793, %v1051
    %v1068 = vadd.f32 %v794, %v1052
    %v1069 = vadd.f32 %v795, %v1053
    %v1070 = vadd.f32 %v796, %v1054
    %v1071 = vadd.f32 %v797, %v1055
    %v1072 = vadd.f32 %v798, %v1056
    %v1073 = vadd.f32 %v799, %v1057
    %v1074 = vadd.f32 %v800, %v1058
    %v1075 = vadd.f32 %v801, %v1059
    %v1076 = vadd.f32 %v802, %v1060
    %v1077 = vadd.f32 %v803, %v1061
    %v1078 = vadd.f32 %v804, %v1062
    %v1079 = vadd.f32 %v805, %v1063
    %v1080 = vadd.f32 %v806, %v1064
    %v1081 = vadd.f32 %v807, %v1065
    %v1082 = vadd.f32 %v808, %v1066
    %1083 = vst [vmem:[#allocation2] sm:$0xff] %v1003
    %1084 = vst [vmem:[#allocation2 + $0x8] sm:$0xff] %v1004
    %1085 = vst [vmem:[#allocation2 + $0x10] sm:$0xff] %v1005
    %1086 = vst [vmem:[#allocation2 + $0x18] sm:$0xff] %v1006
    %1087 = vst [vmem:[#allocation2 + $0x20] sm:$0xff] %v1007
    %1088 = vst [vmem:[#allocation2 + $0x28] sm:$0xff] %v1008
    %1089 = vst [vmem:[#allocation2 + $0x30] sm:$0xff] %v1009
    %1090 = vst [vmem:[#allocation2 + $0x38] sm:$0xff] %v1010
    %1091 = vst [vmem:[#allocation2 + $0x40] sm:$0xff] %v1011
    %1092 = vst [vmem:[#allocation2 + $0x48] sm:$0xff] %v1012
    %1093 = vst [vmem:[#allocation2 + $0x50] sm:$0xff] %v1013
    %1094 = vst [vmem:[#allocation2 + $0x58] sm:$0xff] %v1014
    %1095 = vst [vmem:[#allocation2 + $0x60] sm:$0xff] %v1015
    %1096 = vst [vmem:[#allocation2 + $0x68] sm:$0xff] %v1016
    %1097 = vst [vmem:[#allocation2 + $0x70] sm:$0xff] %v1017
    %1098 = vst [vmem:[#allocation2 + $0x78] sm:$0xff] %v1018
    %1099 = vst [vmem:[#allocation4] sm:$0xff] %v1019
    %1100 = vst [vmem:[#allocation4 + $0x8] sm:$0xff] %v1020
    %1101 = vst [vmem:[#allocation4 + $0x10] sm:$0xff] %v1021
    %1102 = vst [vmem:[#allocation4 + $0x18] sm:$0xff] %v1022
    %1103 = vst [vmem:[#allocation4 + $0x20] sm:$0xff] %v1023
    %1104 = vst [vmem:[#allocation4 + $0x28] sm:$0xff] %v1024
    %1105 = vst [vmem:[#allocation4 + $0x30] sm:$0xff] %v1025
    %1106 = vst [vmem:[#allocation4 + $0x38] sm:$0xff] %v1026
    %1107 = vst [vmem:[#allocation4 + $0x40] sm:$0xff] %v1027
    %1108 = vst [vmem:[#allocation4 + $0x48] sm:$0xff] %v1028
    %1109 = vst [vmem:[#allocation4 + $0x50] sm:$0xff] %v1029
    %1110 = vst [vmem:[#allocation4 + $0x58] sm:$0xff] %v1030
    %1111 = vst [vmem:[#allocation4 + $0x60] sm:$0xff] %v1031
    %1112 = vst [vmem:[#allocation4 + $0x68] sm:$0xff] %v1032
    %1113 = vst [vmem:[#allocation4 + $0x70] sm:$0xff] %v1033
    %1114 = vst [vmem:[#allocation4 + $0x78] sm:$0xff] %v1034
    %1115 = vmatprep.subr.mxu0 %v1067
    %1116 = vmatpush1.msra.mxu0 %v1035
    %1117 = vmatprep.subr.mxu0 %v1068
    %1118 = vmatpush1.msra.mxu0 %v1036
    %1119 = vmatprep.subr.mxu0 %v1069
    %1120 = vmatpush1.msra.mxu0 %v1037
    %1121 = vmatprep.subr.mxu0 %v1070
    %1122 = vmatpush1.msra.mxu0 %v1038
    %1123 = vmatprep.subr.mxu0 %v1071
    %1124 = vmatpush1.msra.mxu0 %v1039
    %1125 = vmatprep.subr.mxu0 %v1072
    %1126 = vmatpush1.msra.mxu0 %v1040
    %1127 = vmatprep.subr.mxu0 %v1073
    %1128 = vmatpush1.msra.mxu0 %v1041
    %1129 = vmatprep.subr.mxu0 %v1074
    %1130 = vmatpush1.msra.mxu0 %v1042
    %1131 = vmatprep.subr.mxu0 %v1075
    %1132 = vmatpush1.msra.mxu0 %v1043
    %1133 = vmatprep.subr.mxu0 %v1076
    %1134 = vmatpush1.msra.mxu0 %v1044
    %1135 = vmatprep.subr.mxu0 %v1077
    %1136 = vmatpush1.msra.mxu0 %v1045
    %1137 = vmatprep.subr.mxu0 %v1078
    %1138 = vmatpush1.msra.mxu0 %v1046
    %1139 = vmatprep.subr.mxu0 %v1079
    %1140 = vmatpush1.msra.mxu0 %v1047
    %1141 = vmatprep.subr.mxu0 %v1080
    %1142 = vmatpush1.msra.mxu0 %v1048
    %1143 = vmatprep.subr.mxu0 %v1081
    %1144 = vmatpush1.msra.mxu0 %v1049
    %1145 = vmatprep.subr.mxu0 %v1082
    %1146 = vmatpush1.msra.mxu0 %v1050
    %1147 = vmatprep.subr.mxu0 0.0
    %1148 = vmatpush1.msra.mxu0 0.0
    %1149 = vmatprep.subr.mxu0 0.0
    %1150 = vmatpush1.msra.mxu0 0.0
    %1151 = vmatprep.subr.mxu0 0.0
    %1152 = vmatpush1.msra.mxu0 0.0
    %1153 = vmatprep.subr.mxu0 0.0
    %1154 = vmatpush1.msra.mxu0 0.0
    %1155 = vmatprep.subr.mxu0 0.0
    %1156 = vmatpush1.msra.mxu0 0.0
    %1157 = vmatprep.subr.mxu0 0.0
    %1158 = vmatpush1.msra.mxu0 0.0
    %1159 = vmatprep.subr.mxu0 0.0
    %1160 = vmatpush1.msra.mxu0 0.0
    %1161 = vmatprep.subr.mxu0 0.0
    %1162 = vmatpush1.msra.mxu0 0.0
    %1163 = vmatprep.subr.mxu0 0.0
    %1164 = vmatpush1.msra.mxu0 0.0
    %1165 = vmatprep.subr.mxu0 0.0
    %1166 = vmatpush1.msra.mxu0 0.0
    %1167 = vmatprep.subr.mxu0 0.0
    %1168 = vmatpush1.msra.mxu0 0.0
    %1169 = vmatprep.subr.mxu0 0.0
    %1170 = vmatpush1.msra.mxu0 0.0
    %1171 = vmatprep.subr.mxu0 0.0
    %1172 = vmatpush1.msra.mxu0 0.0
    %1173 = vmatprep.subr.mxu0 0.0
    %1174 = vmatpush1.msra.mxu0 0.0
    %1175 = vmatprep.subr.mxu0 0.0
    %1176 = vmatpush1.msra.mxu0 0.0
    %1177 = vmatprep.subr.mxu0 0.0
    %1178 = vmatpush1.msra.mxu0 0.0
    %1179 = vmatprep.mubr.f32.mxu0 0.0
    %1180 = vmatmul.mubr.f32.gmra.mrb[0].mxu0 1.0
    %v1181 = vpop.f32.mrb[0].mxu0
    %v1182 = vadd.f32 0.0, %v1181
    %v1183 = vpop.f32.mrb[0].mxu0
    %v1184 = vadd.f32 0.0, %v1183
    %1185 = vdwg.mxu0
    %v1186 = vlaneseq
    %v1187 = vshrl.u32 %v1186, 7
    %v1188 = vsub.s32 0, %v1187
    %v1189 = vrot.slane %v1182, %v1188
    %v1190 = vlaneseq
    %v1191 = vshrl.u32 %v1190, 7
    %v1192 = vsub.s32 0, %v1191
    %v1193 = vrot.slane %v1184, %v1192
    %1194 = vst [vmem:[#allocation6] sm:$0xff] %v1189
    %1195 = vst [vmem:[#allocation6 + $0x8] sm:$0xff] %v1193
    // Predicated region
    $region14: #{tpu_custom_call.1} parent=1 // pred_check
      _
    $region15: #{tpu_custom_call.1} parent=1 // pred_check_branch
      %1197 = sbr.rel (0) target = $region17
    $region16: #{tpu_custom_call.1} parent=1 // pred_region
      %s1199 = ssub.s32 2048, 2048
      %1200 = vsyncadd [#allocation3], %s1199
      %s1201 = sshll.u32 [#allocation2], 4
      %s1202 = int_to_ptr.vmem [resolvable:$true] %s1201
      %1207 = dma.vmem_to_hbm [thread:$0]  %s1202, 2048, %s3, [#allocation3], 128, 128, 8
    $region17: #{tpu_custom_call.1} parent=1 // pred_fallthru
      _
    // Predicated region
    $region18: #{tpu_custom_call.1} parent=1 // pred_check
      _
    $region19: #{tpu_custom_call.1} parent=1 // pred_check_branch
      %1209 = sbr.rel (0) target = $region21
    $region20: #{tpu_custom_call.1} parent=1 // pred_region
      %s1211 = ssub.s32 2048, 2048
      %1212 = vsyncadd [#allocation5], %s1211
      %s1213 = sshll.u32 [#allocation4], 4
      %s1214 = int_to_ptr.vmem [resolvable:$true] %s1213
      %1219 = dma.vmem_to_hbm [thread:$0]  %s1214, 2048, %s4, [#allocation5], 128, 128, 8
    $region21: #{tpu_custom_call.1} parent=1 // pred_fallthru
      _
    // Predicated region
    $region22: #{tpu_custom_call.1} parent=1 // pred_check
      _
    $region23: #{tpu_custom_call.1} parent=1 // pred_check_branch
      %1221 = sbr.rel (0) target = $region25
    $region24: #{tpu_custom_call.1} parent=1 // pred_region
      %s1223 = ssub.s32 256, 256
      %1224 = vsyncadd [#allocation5], %s1223
      %s1226 = sshll.u32 [#allocation6], 4
      %s1227 = int_to_ptr.vmem [resolvable:$true] %s1226
      %1229 = dma.vmem_to_hbm [thread:$0]  %s1227, 256, %s5, [#allocation5]
    $region25: #{tpu_custom_call.1} parent=1 // pred_fallthru
      _
    // Predicated region
    $region26: #{tpu_custom_call.1} parent=1 // pred_check
      _
    $region27: #{tpu_custom_call.1} parent=1 // pred_check_branch
      %1231 = sbr.rel (0) target = $region29
    $region28: #{tpu_custom_call.1} parent=1 // pred_region
      %1232 = dma.done [#allocation3], 2048
    $region29: #{tpu_custom_call.1} parent=1 // pred_fallthru
      _
    // Predicated region
    $region30: #{tpu_custom_call.1} parent=1 // pred_check
      _
    $region31: #{tpu_custom_call.1} parent=1 // pred_check_branch
      %1234 = sbr.rel (0) target = $region33
    $region32: #{tpu_custom_call.1} parent=1 // pred_region
      %1235 = dma.done [#allocation5], 2048
    $region33: #{tpu_custom_call.1} parent=1 // pred_fallthru
      _
    // Predicated region
    $region34: #{tpu_custom_call.1} parent=1 // pred_check
      _
    $region35: #{tpu_custom_call.1} parent=1 // pred_check_branch
      %1237 = sbr.rel (0) target = $region37
    $region36: #{tpu_custom_call.1} parent=1 // pred_region
      %1238 = dma.done [#allocation5], 256
    $region37: #{tpu_custom_call.1} parent=1 // pred_fallthru
      _
    %1239 = vsyncpa [#allocation3], 1
    %1240 = vsyncpa [#allocation5], 1

</llo_original>
